<compile_context>
chip_gen: v7x
topology: tpu7x:2x2x1
jax: 0.10.0
libtpu: 0.0.40
codegen_flags: <defaults>
</compile_context>

<pallas_src>
import functools

import jax
import jax.numpy as jnp
from jax.experimental import pallas as pl
from jax.experimental.pallas import tpu as pltpu


def _pa_kernel(x_ref, w1t_ref, b1_ref, w2_ref, b2_ref, o_ref):
    # x_ref  : (1, C, TP) tile of the input, pixels in the lane axis.
    # w1t_ref: (Cr, C)  conv1 weight (transposed, cast to x.dtype in wrapper).
    # b1_ref : (Cr, 1), w2_ref: (Cr, 1), b2_ref: (1, 1)  -- all f32.
    x = x_ref[0]                                                   # (C, TP), native dtype
    # conv1 (1x1): hidden = relu(W1^T @ x + b1) -> (Cr, TP); f32 accumulation
    # on the MXU, operands stay in x's dtype (no full-tile cast).
    # NOTE(v7x): with Cr <= C//8 this degenerate-shape matmul should stay
    # hidden under the HBM DMA stream; if a trace shows it exposed, replace it
    # with an unrolled VPU multiply-accumulate over C.
    h = jnp.dot(w1t_ref[...], x, preferred_element_type=jnp.float32)
    h = jnp.maximum(h + b1_ref[...], 0.0)                          # lane-broadcast bias
    # conv2 (1x1) to one channel: degenerate matmul -> VPU mul + sublane reduce.
    y = jnp.sum(w2_ref[...] * h, axis=0, keepdims=True)            # (1, TP)
    y = jax.nn.sigmoid(y + b2_ref[...])
    # Channel-broadcast multiply in the input dtype (sublane broadcast over C).
    o_ref[0] = x * y.astype(x.dtype)


def _device_budgets():
    """Generation-aware (tile_target_bytes, vmem_limit_bytes)."""
    try:
        vmem = pltpu.get_tpu_info().vmem_capacity_bytes
    except Exception:
        vmem = None
    if vmem is not None and vmem > 64 * 1024 * 1024:
        # v5e / v6e: 128 MiB physical VMEM -> big tiles, generous scoped limit.
        return 8 * 1024 * 1024, 64 * 1024 * 1024
    # v7x (64 MiB VMEM) or unknown: keep in+out double-buffered (~4x tile)
    # comfortably under the 48 MiB scoped limit.
    return 6 * 1024 * 1024, 48 * 1024 * 1024


def _choose_pixel_tile(P, N, C, itemsize, target_bytes):
    """Pixel tile: multiple of 128, <= P, one x tile near `target_bytes`.

    The grid uses cdiv, so TP does not need to divide P (last block is
    masked).  Also keeps at least ~4 total grid steps when possible so both
    v7x TensorCores get work and the pipeline can overlap.
    """
    if P < 128:
        return P                      # full-extent block is the only legal choice
    cap = max(128, (target_bytes // max(1, C * itemsize)) // 128 * 128)
    tp = min(cap, (P // 128) * 128)
    while N * (-(-P // tp)) < 4 and tp > 128:
        tp = max(128, ((tp // 2) // 128) * 128)
    return tp


@functools.partial(jax.jit, static_argnums=(5, 6))
def _pa_layer_impl(x_nchw, w1, b1, w2, b2, tile_target_bytes, vmem_limit_bytes):
    N, C, H, W = x_nchw.shape
    Cr = w1.shape[1]
    P = H * W

    TP = _choose_pixel_tile(P, N, C, jnp.dtype(x_nchw.dtype).itemsize,
                            tile_target_bytes)
    n_ptiles = pl.cdiv(P, TP)

    # Free reshape: NCHW is already contiguous as (N, C, P); no transposes.
    x3 = x_nchw.reshape(N, C, P)
    # Tiny resident weights.  w1^T stays in x's dtype (avoids a full-tile cast
    # before the MXU); biases / w2 stay f32 for the f32 epilogue.
    w1t = jnp.transpose(w1).astype(x_nchw.dtype)        # (Cr, C)
    b1_2d = b1.reshape(Cr, 1).astype(jnp.float32)
    w2_2d = w2.reshape(Cr, 1).astype(jnp.float32)
    b2_2d = b2.reshape(1, 1).astype(jnp.float32)

    # NOTE: input_output_aliases={0: 0} would save the output HBM allocation,
    # but since the jit input is not donated XLA would insert a defensive copy
    # (extra bandwidth), so we leave it off.
    out3 = pl.pallas_call(
        _pa_kernel,
        out_shape=jax.ShapeDtypeStruct((N, C, P), x_nchw.dtype),
        grid_spec=pltpu.PrefetchScalarGridSpec(
            num_scalar_prefetch=0,
            grid=(N, n_ptiles),
            in_specs=[
                pl.BlockSpec((1, C, TP), lambda n, p: (n, 0, p)),   # x tile
                pl.BlockSpec((Cr, C), lambda n, p: (0, 0)),         # w1^T (full)
                pl.BlockSpec((Cr, 1), lambda n, p: (0, 0)),         # b1   (full)
                pl.BlockSpec((Cr, 1), lambda n, p: (0, 0)),         # w2   (full)
                pl.BlockSpec((1, 1), lambda n, p: (0, 0)),          # b2   (full)
            ],
            out_specs=pl.BlockSpec((1, C, TP), lambda n, p: (n, 0, p)),
        ),
        compiler_params=pltpu.CompilerParams(
            dimension_semantics=("parallel", "parallel"),
            vmem_limit_bytes=vmem_limit_bytes,
        ),
    )(x3, w1t, b1_2d, w2_2d, b2_2d)

    return out3.reshape(N, C, H, W)                     # free reshape back


def pa_layer(x_nchw, w1, b1, w2, b2, *, tile_target_bytes=None,
             vmem_limit_bytes=None):
    """x_nchw: (N, C, H, W); w1: (C, C//8); b1: (C//8,); w2: (C//8, 1); b2: (1,)."""
    if tile_target_bytes is None or vmem_limit_bytes is None:
        tt, vl = _device_budgets()
        tile_target_bytes = tile_target_bytes or tt
        vmem_limit_bytes = vmem_limit_bytes or vl
    return _pa_layer_impl(x_nchw, w1, b1, w2, b2,
                          int(tile_target_bytes), int(vmem_limit_bytes))


def _reference(x_nchw, w1, b1, w2, b2):
    # Pure-JAX reference of the PyTorch forward for correctness checking.
    N, C, H, W = x_nchw.shape
    x = x_nchw.reshape(N, C, H * W)
    h = jnp.maximum(jnp.einsum("cr,ncp->nrp", w1, x) + b1[None, :, None], 0.0)
    y = jax.nn.sigmoid(jnp.einsum("ro,nrp->nop", w2, h) + b2[None, :, None])
    return (x * y).reshape(N, C, H, W)


if __name__ == "__main__":
    key = jax.random.PRNGKey(0)
    k_x, k_w1, k_b1, k_w2, k_b2 = jax.random.split(key, 5)

    N, C, H, W = 2, 16, 16, 16          # channel=16 -> hidden = channel // 8 = 2
    Cr = C // 8

    x = jax.random.normal(k_x, (N, C, H, W), dtype=jnp.float32)
    # Deterministic synthetic parameters (Conv2d 1x1 weights as dense matrices).
    w1 = jax.random.normal(k_w1, (C, Cr), dtype=jnp.float32) * 0.1
    b1 = jax.random.normal(k_b1, (Cr,), dtype=jnp.float32) * 0.1
    w2 = jax.random.normal(k_w2, (Cr, 1), dtype=jnp.float32) * 0.1
    b2 = jax.random.normal(k_b2, (1,), dtype=jnp.float32) * 0.1

    out = pa_layer(x, w1, b1, w2, b2)
    jax.block_until_ready(out)

    ref = _reference(x, w1, b1, w2, b2)
    assert out.shape == x.shape
    assert jnp.allclose(out, ref, atol=1e-5, rtol=1e-5), "mismatch vs reference"

    print("KERNEL_OK")
</pallas_src>

<mosaic_0001>
module attributes {stable_mosaic.version = 11 : i64} {
  func.func @_pa_kernel(%arg0: i32, %arg1: i32, %arg2: memref<1x16x128xf32, #tpu.memory_space<vmem>>, %arg3: memref<2x16xf32, #tpu.memory_space<vmem>>, %arg4: memref<2x1xf32, #tpu.memory_space<vmem>>, %arg5: memref<2x1xf32, #tpu.memory_space<vmem>>, %arg6: memref<1x1xf32, #tpu.memory_space<vmem>>, %arg7: memref<1x16x128xf32, #tpu.memory_space<vmem>>) attributes {dimension_semantics = [#tpu.dimension_semantics<parallel>, #tpu.dimension_semantics<parallel>], iteration_bounds = array<i64: 2, 2>, scalar_prefetch = 0 : i64, scratch_operands = 0 : i64, tpu.core_type = #tpu.core_type<tc>, window_params = [{transform_indices = @transform_0, window_bounds = array<i64: 1, 16, 128>}, {pipeline_mode = #tpu.pipeline_mode<synchronous>, transform_indices = @transform_1, window_bounds = array<i64: 2, 16>}, {pipeline_mode = #tpu.pipeline_mode<synchronous>, transform_indices = @transform_2, window_bounds = array<i64: 2, 1>}, {pipeline_mode = #tpu.pipeline_mode<synchronous>, transform_indices = @transform_3, window_bounds = array<i64: 2, 1>}, {pipeline_mode = #tpu.pipeline_mode<synchronous>, transform_indices = @transform_4, window_bounds = array<i64: 1, 1>}, {transform_indices = @transform_5, window_bounds = array<i64: 1, 16, 128>}]} {
    %c0 = arith.constant 0 : index
    %c0_0 = arith.constant 0 : index
    %c0_1 = arith.constant 0 : index
    %0 = vector.load %arg2[%c0, %c0_0, %c0_1] : memref<1x16x128xf32, #tpu.memory_space<vmem>>, vector<1x16x128xf32>
    %1 = vector.shape_cast %0 : vector<1x16x128xf32> to vector<16x128xf32>
    %c0_2 = arith.constant 0 : index
    %c0_3 = arith.constant 0 : index
    %2 = vector.load %arg3[%c0_2, %c0_3] : memref<2x16xf32, #tpu.memory_space<vmem>>, vector<2x16xf32>
    %cst = arith.constant dense<0.000000e+00> : vector<2x128xf32>
    %3 = tpu.matmul %2, %1, %cst {dimension_numbers = #tpu.dot_dimension_numbers<[1], [0], [0], [1], [0, 0, 1, 1], [], []>} : vector<2x16xf32>, vector<16x128xf32>, vector<2x128xf32> -> vector<2x128xf32>
    %c0_4 = arith.constant 0 : index
    %c0_5 = arith.constant 0 : index
    %4 = vector.load %arg4[%c0_4, %c0_5] : memref<2x1xf32, #tpu.memory_space<vmem>>, vector<2x1xf32>
    %5 = vector.broadcast %4 : vector<2x1xf32> to vector<2x128xf32>
    %6 = arith.addf %3, %5 : vector<2x128xf32>
    %cst_6 = arith.constant 0.000000e+00 : f32
    %7 = vector.broadcast %cst_6 : f32 to vector<2x128xf32>
    %8 = arith.maximumf %6, %7 : vector<2x128xf32>
    %c0_7 = arith.constant 0 : index
    %c0_8 = arith.constant 0 : index
    %9 = vector.load %arg5[%c0_7, %c0_8] : memref<2x1xf32, #tpu.memory_space<vmem>>, vector<2x1xf32>
    %10 = vector.broadcast %9 : vector<2x1xf32> to vector<2x128xf32>
    %11 = arith.mulf %10, %8 : vector<2x128xf32>
    %cst_9 = arith.constant dense<0.000000e+00> : vector<128xf32>
    %12 = vector.multi_reduction <add>, %11, %cst_9 [0] : vector<2x128xf32> to vector<128xf32>
    %13 = vector.shape_cast %12 : vector<128xf32> to vector<1x128xf32>
    %c0_10 = arith.constant 0 : index
    %c0_11 = arith.constant 0 : index
    %14 = vector.load %arg6[%c0_10, %c0_11] : memref<1x1xf32, #tpu.memory_space<vmem>>, vector<1x1xf32>
    %15 = vector.broadcast %14 : vector<1x1xf32> to vector<1x128xf32>
    %16 = arith.addf %13, %15 : vector<1x128xf32>
    %17 = arith.negf %16 : vector<1x128xf32>
    %18 = math.exp %17 : vector<1x128xf32>
    %cst_12 = arith.constant 1.000000e+00 : f32
    %19 = vector.broadcast %cst_12 : f32 to vector<1x128xf32>
    %20 = arith.addf %19, %18 : vector<1x128xf32>
    %21 = arith.divf %19, %20 : vector<1x128xf32>
    %22 = vector.broadcast %21 : vector<1x128xf32> to vector<16x128xf32>
    %23 = arith.mulf %1, %22 : vector<16x128xf32>
    %c0_13 = arith.constant 0 : index
    %c0_14 = arith.constant 0 : index
    %c0_15 = arith.constant 0 : index
    %24 = vector.load %arg7[%c0_13, %c0_14, %c0_15] : memref<1x16x128xf32, #tpu.memory_space<vmem>>, vector<1x16x128xf32>
    %25 = vector.shape_cast %24 : vector<1x16x128xf32> to vector<16x128xf32>
    %26 = vector.shape_cast %23 : vector<16x128xf32> to vector<1x16x128xf32>
    tpu.vector_store %arg7[%c0_13, %c0_14, %c0_15], %26 {strides = array<i32>} : memref<1x16x128xf32, #tpu.memory_space<vmem>>, vector<1x16x128xf32>,
    return
  }
  func.func @transform_0(%arg0: i32, %arg1: i32) -> (i32, i32, i32) {
    %c0_i32 = arith.constant 0 : i32
    %c0_i32_0 = arith.constant 0 : i32
    return %arg0, %c0_i32, %arg1 : i32, i32, i32
  }
  func.func @transform_1(%arg0: i32, %arg1: i32) -> (i32, i32) {
    %c0_i32 = arith.constant 0 : i32
    %c0_i32_0 = arith.constant 0 : i32
    %c0_i32_1 = arith.constant 0 : i32
    return %c0_i32, %c0_i32_0 : i32, i32
  }
  func.func @transform_2(%arg0: i32, %arg1: i32) -> (i32, i32) {
    %c0_i32 = arith.constant 0 : i32
    %c0_i32_0 = arith.constant 0 : i32
    %c0_i32_1 = arith.constant 0 : i32
    return %c0_i32, %c0_i32_0 : i32, i32
  }
  func.func @transform_3(%arg0: i32, %arg1: i32) -> (i32, i32) {
    %c0_i32 = arith.constant 0 : i32
    %c0_i32_0 = arith.constant 0 : i32
    %c0_i32_1 = arith.constant 0 : i32
    return %c0_i32, %c0_i32_0 : i32, i32
  }
  func.func @transform_4(%arg0: i32, %arg1: i32) -> (i32, i32) {
    %c0_i32 = arith.constant 0 : i32
    %c0_i32_0 = arith.constant 0 : i32
    %c0_i32_1 = arith.constant 0 : i32
    return %c0_i32, %c0_i32_0 : i32, i32
  }
  func.func @transform_5(%arg0: i32, %arg1: i32) -> (i32, i32, i32) {
    %c0_i32 = arith.constant 0 : i32
    %c0_i32_0 = arith.constant 0 : i32
    return %arg0, %c0_i32, %arg1 : i32, i32, i32
  }
}

</mosaic_0001>

<llo_original>
// kernel: _pa_layer_impl.1
$region0: #{_pa_layer_impl.1}
  #allocation0 [shape = 'u32[]', space=smem, size = 0x4, offset = 0x4, fixed_abs, tag = 'smem constant byte address 0x4 - core index']
  #allocation1 [shape = 'u32[144,128]{1,0:T(1,128)}', space=vmem, size = 0x12000, scoped, tag = 'internal scratch']
  #allocation2 [shape = 'f32[1,1]{1,0:T(1,128)S(1)}', space=vmem, size = 0x200, scoped, tag = 'scoped memory for _pa_layer_impl.1']
  %s0 = inlined_call_operand.vmem [shape: f32[2,16,256], index: 0, kind: input, shape index: {}]
  %s1 = inlined_call_operand.vmem [shape: f32[2,16], index: 1, kind: input, shape index: {}]
  %s2 = inlined_call_operand.vmem [shape: f32[2,1], index: 2, kind: input, shape index: {}]
  %s3 = inlined_call_operand.vmem [shape: f32[2,1], index: 3, kind: input, shape index: {}]
  %s4 = inlined_call_operand.<no memory space> [shape: f32[1,1], index: 4, kind: input, shape index: {}]
  %s5 = inlined_call_operand.vmem [shape: f32[2,16,256], index: 5, kind: output, shape index: {}]
  %s6 = sld [smem:[#allocation0]]
  $region125: #{_pa_layer_impl.1} parent=0
    _
  %s8 = ssub.s32 1, %s6
  %s9 = scalar_select 0, %s8, %s6
  %v10 = vstv %s4
  %11 = vst [vmem:[#allocation2] sm:$0x1] %v10
  $region1: #{_pa_layer_impl.1} parent=0
    #allocation3 [shape = 'u8[16384]{0}', space=vmem, size = 0x4000, scoped, tag = 'input window, operand 0']
    #allocation4 [shape = 'u8[16384]{0}', space=vmem, size = 0x4000, scoped, tag = 'output window, operand 0']
    loop: start=0, step=1, limit=6
    $region2: #{_pa_layer_impl.1} parent=1 // loop_pre_header
      _
    $region3: #{_pa_layer_impl.1} parent=1 // loop_header
      %s13 = sphi 0, %s17
      %p14 = scmp.ge.s32.totalorder %s13, 6
      %s20 = sphi 0, %s32
      %s21 = sphi 0, %s28
      %s22 = sphi 0, %s20
      %s23 = sphi 0, %s21
      %s24 = sphi 0, %s22
      %s25 = sphi 0, %s23
      %s37 = sphi 0, %s39
      %s40 = sphi 0, %s37
      %s41 = sphi 0, %s40
      %s57 = sphi 0, %s41
      %s61 = sphi 0, %s61
      %s63 = sphi 0, %s61
      %s64 = sphi 0, %s63
      %s78 = sphi 0, %s64
      %s82 = sphi 0, %s82
      %s84 = sphi 0, %s82
      %s85 = sphi 0, %s84
      %s99 = sphi 0, %s85
      %s103 = sphi 0, %s103
      %s105 = sphi 0, %s103
      %s106 = sphi 0, %s105
      %s120 = sphi 0, %s106
      %s124 = sphi 0, %s124
      %s126 = sphi 0, %s124
      %s127 = sphi 0, %s126
      %s141 = sphi 0, %s127
      %s149 = sphi 0, %s151
      %s152 = sphi 0, %s149
      %s153 = sphi 0, %s152
      %s169 = sphi 0, %s153
    $region4: #{_pa_layer_impl.1} parent=1 // loop_header_branch
      %16 = sbr.rel (%p14) target = $region8
    $region5: #{_pa_layer_impl.1} parent=1 // loop_body
      %s18 = ssub.s32 %s13, 1
      %s19 = ssub.s32 %s13, 2
      %s26 = sadd.s32 1, %s21
      %p27 = scmp.ge.s32.totalorder %s26, 2
      %s28 = scalar_select %p27, 0, %s26
      %s29 = sadd.s32 1, %s20
      %s30 = scalar_select %p27, %s29, %s20
      %p31 = scmp.ge.s32.totalorder %s30, 2
      %s32 = scalar_select %p31, 0, %s30
      %s33 = ssub.s32 %s20, %s32
      %s34 = ssub.s32 %s21, %s28
      %s35 = sor.u32 %s33, %s34
      %p36 = scmp.eq.s32.totalorder %s35, 0
      %s38 = sadd.s32 %s37, 1
      %s39 = scalar_select %p36, %s37, %s38
      %p42 = pneg %p36
      %p43 = scmp.eq.s32.totalorder %s13, 3
      %p44 = por %p42, %p43
      %p45 = scmp.ne.s32.totalorder %s37, %s40
      %p46 = scmp.eq.s32.totalorder %s13, 0
      %p47 = por %p45, %p46
      %p48 = scmp.ne.s32.totalorder %s37, %s40
      %p49 = scmp.eq.s32.totalorder %s18, 3
      %p50 = por %p48, %p49
      %p51 = scmp.ne.s32.totalorder %s40, %s41
      %p52 = scmp.eq.s32.totalorder %s18, 0
      %p53 = por %p51, %p52
      %p54 = scmp.ne.s32.totalorder %s40, %s41
      %p55 = scmp.eq.s32.totalorder %s19, 3
      %p56 = por %p54, %p55
      %p58 = scmp.ne.s32.totalorder %s41, %s57
      %p59 = scmp.eq.s32.totalorder %s19, 0
      %p60 = por %p58, %p59
      %s62 = sadd.s32 %s61, 1
      %p65 = scmp.eq.s32.totalorder %s13, 3
      %p66 = scmp.ne.s32.totalorder %s61, %s63
      %p67 = scmp.eq.s32.totalorder %s13, 0
      %p68 = por %p66, %p67
      %p69 = scmp.ne.s32.totalorder %s61, %s63
      %p70 = scmp.eq.s32.totalorder %s18, 3
      %p71 = por %p69, %p70
      %p72 = scmp.ne.s32.totalorder %s63, %s64
      %p73 = scmp.eq.s32.totalorder %s18, 0
      %p74 = por %p72, %p73
      %p75 = scmp.ne.s32.totalorder %s63, %s64
      %p76 = scmp.eq.s32.totalorder %s19, 3
      %p77 = por %p75, %p76
      %p79 = scmp.ne.s32.totalorder %s64, %s78
      %p80 = scmp.eq.s32.totalorder %s19, 0
      %p81 = por %p79, %p80
      %s83 = sadd.s32 %s82, 1
      %p86 = scmp.eq.s32.totalorder %s13, 3
      %p87 = scmp.ne.s32.totalorder %s82, %s84
      %p88 = scmp.eq.s32.totalorder %s13, 0
      %p89 = por %p87, %p88
      %p90 = scmp.ne.s32.totalorder %s82, %s84
      %p91 = scmp.eq.s32.totalorder %s18, 3
      %p92 = por %p90, %p91
      %p93 = scmp.ne.s32.totalorder %s84, %s85
      %p94 = scmp.eq.s32.totalorder %s18, 0
      %p95 = por %p93, %p94
      %p96 = scmp.ne.s32.totalorder %s84, %s85
      %p97 = scmp.eq.s32.totalorder %s19, 3
      %p98 = por %p96, %p97
      %p100 = scmp.ne.s32.totalorder %s85, %s99
      %p101 = scmp.eq.s32.totalorder %s19, 0
      %p102 = por %p100, %p101
      %s104 = sadd.s32 %s103, 1
      %p107 = scmp.eq.s32.totalorder %s13, 3
      %p108 = scmp.ne.s32.totalorder %s103, %s105
      %p109 = scmp.eq.s32.totalorder %s13, 0
      %p110 = por %p108, %p109
      %p111 = scmp.ne.s32.totalorder %s103, %s105
      %p112 = scmp.eq.s32.totalorder %s18, 3
      %p113 = por %p111, %p112
      %p114 = scmp.ne.s32.totalorder %s105, %s106
      %p115 = scmp.eq.s32.totalorder %s18, 0
      %p116 = por %p114, %p115
      %p117 = scmp.ne.s32.totalorder %s105, %s106
      %p118 = scmp.eq.s32.totalorder %s19, 3
      %p119 = por %p117, %p118
      %p121 = scmp.ne.s32.totalorder %s106, %s120
      %p122 = scmp.eq.s32.totalorder %s19, 0
      %p123 = por %p121, %p122
      %s125 = sadd.s32 %s124, 1
      %p128 = scmp.eq.s32.totalorder %s13, 3
      %p129 = scmp.ne.s32.totalorder %s124, %s126
      %p130 = scmp.eq.s32.totalorder %s13, 0
      %p131 = por %p129, %p130
      %p132 = scmp.ne.s32.totalorder %s124, %s126
      %p133 = scmp.eq.s32.totalorder %s18, 3
      %p134 = por %p132, %p133
      %p135 = scmp.ne.s32.totalorder %s126, %s127
      %p136 = scmp.eq.s32.totalorder %s18, 0
      %p137 = por %p135, %p136
      %p138 = scmp.ne.s32.totalorder %s126, %s127
      %p139 = scmp.eq.s32.totalorder %s19, 3
      %p140 = por %p138, %p139
      %p142 = scmp.ne.s32.totalorder %s127, %s141
      %p143 = scmp.eq.s32.totalorder %s19, 0
      %p144 = por %p142, %p143
      %s145 = ssub.s32 %s20, %s32
      %s146 = ssub.s32 %s21, %s28
      %s147 = sor.u32 %s145, %s146
      %p148 = scmp.eq.s32.totalorder %s147, 0
      %s150 = sadd.s32 %s149, 1
      %s151 = scalar_select %p148, %s149, %s150
      %p154 = pneg %p148
      %p155 = scmp.eq.s32.totalorder %s13, 3
      %p156 = por %p154, %p155
      %p157 = scmp.ne.s32.totalorder %s149, %s152
      %p158 = scmp.eq.s32.totalorder %s13, 0
      %p159 = por %p157, %p158
      %p160 = scmp.ne.s32.totalorder %s149, %s152
      %p161 = scmp.eq.s32.totalorder %s18, 3
      %p162 = por %p160, %p161
      %p163 = scmp.ne.s32.totalorder %s152, %s153
      %p164 = scmp.eq.s32.totalorder %s18, 0
      %p165 = por %p163, %p164
      %p166 = scmp.ne.s32.totalorder %s152, %s153
      %p167 = scmp.eq.s32.totalorder %s19, 3
      %p168 = por %p166, %p167
      %p170 = scmp.ne.s32.totalorder %s153, %s169
      %p171 = scmp.eq.s32.totalorder %s19, 0
      %p172 = por %p170, %p171
      %p173 = scmp.le.s32.totalorder 1, %s13
      %p174 = scmp.lt.s32.totalorder %s13, 5
      %p175 = pnand %p173, %p174
      %p176 = pneg %p175
      // Predicated region
      $region9: #{_pa_layer_impl.1} parent=5 // pred_check
        _
      $region10: #{_pa_layer_impl.1} parent=5 // pred_check_branch
        %178 = sbr.rel (%p175) target = $region12
      $region11: #{_pa_layer_impl.1} parent=5 // pred_region
        %s179 = ssub.s32 %s13, 1
        // Predicated region
        $region13: #{_pa_layer_impl.1} parent=11 // pred_check
          %p180 = pneg %p74
        $region14: #{_pa_layer_impl.1} parent=11 // pred_check_branch
          %182 = sbr.rel (%p180) target = $region16
        $region15: #{_pa_layer_impl.1} parent=11 // pred_region
          _
        $region16: #{_pa_layer_impl.1} parent=11 // pred_fallthru
          _
        // Predicated region
        $region17: #{_pa_layer_impl.1} parent=11 // pred_check
          %p183 = pneg %p95
        $region18: #{_pa_layer_impl.1} parent=11 // pred_check_branch
          %185 = sbr.rel (%p183) target = $region20
        $region19: #{_pa_layer_impl.1} parent=11 // pred_region
          _
        $region20: #{_pa_layer_impl.1} parent=11 // pred_fallthru
          _
        // Predicated region
        $region21: #{_pa_layer_impl.1} parent=11 // pred_check
          %p186 = pneg %p116
        $region22: #{_pa_layer_impl.1} parent=11 // pred_check_branch
          %188 = sbr.rel (%p186) target = $region24
        $region23: #{_pa_layer_impl.1} parent=11 // pred_region
          _
        $region24: #{_pa_layer_impl.1} parent=11 // pred_fallthru
          _
        // Predicated region
        $region25: #{_pa_layer_impl.1} parent=11 // pred_check
          %p189 = pneg %p137
        $region26: #{_pa_layer_impl.1} parent=11 // pred_check_branch
          %191 = sbr.rel (%p189) target = $region28
        $region27: #{_pa_layer_impl.1} parent=11 // pred_region
          _
        $region28: #{_pa_layer_impl.1} parent=11 // pred_fallthru
          _
      $region12: #{_pa_layer_impl.1} parent=5 // pred_fallthru
        _
      %p192 = scmp.lt.s32.totalorder %s13, 4
      // Predicated region
      $region29: #{_pa_layer_impl.1} parent=5 // pred_check
        %p193 = pneg %p192
      $region30: #{_pa_layer_impl.1} parent=5 // pred_check_branch
        %195 = sbr.rel (%p193) target = $region32
      $region31: #{_pa_layer_impl.1} parent=5 // pred_region
        // Predicated region
        $region33: #{_pa_layer_impl.1} parent=31 // pred_check
          %p196 = pneg %p47
        $region34: #{_pa_layer_impl.1} parent=31 // pred_check_branch
          %198 = sbr.rel (%p196) target = $region36
        $region35: #{_pa_layer_impl.1} parent=31 // pred_region
          %s199 = sand.u32 %s37, 1
          %s200 = sand.u32 %s37, 1
          %s201 = smul.addr %s200, 16
          %s202 = scalar_lea.vmem [#allocation3], %s201
          %s203 = smul.addr %s20, 4
          %s204 = sadd.s32 %s21, %s203
          %s205 = smul.addr %s204, 8
          %s206 = scalar_lea.vmem %s0, %s205
          // Predicated region
          $region37: #{_pa_layer_impl.1} parent=35 // pred_check
            _
          $region38: #{_pa_layer_impl.1} parent=35 // pred_check_branch
            %208 = sbr.rel (0) target = $region40
          $region39: #{_pa_layer_impl.1} parent=35 // pred_region
            // Predicated region
            $region41: #{_pa_layer_impl.1} parent=39 // pred_check
              _
            $region42: #{_pa_layer_impl.1} parent=39 // pred_check_branch
              %210 = sbr.rel (0) target = $region44
            $region43: #{_pa_layer_impl.1} parent=39 // pred_region
              // Predicated region
              $region56: #{_pa_layer_impl.1} parent=43 // pred_check
                _
              $region57: #{_pa_layer_impl.1} parent=43 // pred_check_branch
                %227 = sbr.rel (0) target = $region59
              $region58: #{_pa_layer_impl.1} parent=43 // pred_region
                loop: start=0, step=1, limit=1
                $region60: #{_pa_layer_impl.1} parent=58 // loop_pre_header
                  _
                $region61: #{_pa_layer_impl.1} parent=58 // loop_header
                  %s229 = sphi 0, %s233
                  %p230 = scmp.ge.s32.totalorder %s229, 1
                  %s234 = sphi %s206, %s206
                  %s235 = sphi %s202, %s202
                $region62: #{_pa_layer_impl.1} parent=58 // loop_header_branch
                  %232 = sbr.rel (%p230) target = $region66
                $region63: #{_pa_layer_impl.1} parent=58 // loop_body
                  %v236 = vld [vmem:[%s234] sm:$0xff]
                  %237 = vst [vmem:[%s235] sm:$0xff] %v236
                  %v238 = vld [vmem:[%s234 + $0x10] sm:$0xff]
                  %239 = vst [vmem:[%s235 + $0x8] sm:$0xff] %v238
                $region64: #{_pa_layer_impl.1} parent=58 // loop_footer
                  %s233 = sadd.s32 1, %s229
                $region65: #{_pa_layer_impl.1} parent=58 // loop_footer_branch
                  %228 = sbr.rel target = $region61
                $region66: #{_pa_layer_impl.1} parent=58 // loop_exit
                  _
              $region59: #{_pa_layer_impl.1} parent=43 // pred_fallthru
                _
              // Predicated region
              $region67: #{_pa_layer_impl.1} parent=43 // pred_check
                _
              $region68: #{_pa_layer_impl.1} parent=43 // pred_check_branch
                %241 = sbr.rel target = $region70
              $region69: #{_pa_layer_impl.1} parent=43 // pred_region
                _
              $region70: #{_pa_layer_impl.1} parent=43 // pred_fallthru
                _
            $region44: #{_pa_layer_impl.1} parent=39 // pred_fallthru
              _
            // Predicated region
            $region45: #{_pa_layer_impl.1} parent=39 // pred_check
              _
            $region46: #{_pa_layer_impl.1} parent=39 // pred_check_branch
              %212 = sbr.rel target = $region48
            $region47: #{_pa_layer_impl.1} parent=39 // pred_region
              loop: start=0, step=1, limit=1
              $region49: #{_pa_layer_impl.1} parent=47 // loop_pre_header
                _
              $region50: #{_pa_layer_impl.1} parent=47 // loop_header
                %s215 = sphi 0, %s219
                %p216 = scmp.ge.s32.totalorder %s215, 1
                %s220 = sphi %s206, %s206
                %s221 = sphi %s202, %s202
              $region51: #{_pa_layer_impl.1} parent=47 // loop_header_branch
                %218 = sbr.rel (%p216) target = $region55
              $region52: #{_pa_layer_impl.1} parent=47 // loop_body
                %v222 = vld [vmem:[%s220] sm:$0xff]
                %223 = vst [vmem:[%s221] sm:$0xff] %v222
                %v224 = vld [vmem:[%s220 + $0x10] sm:$0xff]
                %225 = vst [vmem:[%s221 + $0x8] sm:$0xff] %v224
              $region53: #{_pa_layer_impl.1} parent=47 // loop_footer
                %s219 = sadd.s32 1, %s215
              $region54: #{_pa_layer_impl.1} parent=47 // loop_footer_branch
                %214 = sbr.rel target = $region50
              $region55: #{_pa_layer_impl.1} parent=47 // loop_exit
                _
            $region48: #{_pa_layer_impl.1} parent=39 // pred_fallthru
              _
          $region40: #{_pa_layer_impl.1} parent=35 // pred_fallthru
            _
          %242 = vnop
        $region36: #{_pa_layer_impl.1} parent=31 // pred_fallthru
          _
      $region32: #{_pa_layer_impl.1} parent=5 // pred_fallthru
        _
      %p243 = scmp.le.s32.totalorder 1, %s13
      %p244 = scmp.lt.s32.totalorder %s13, 5
      %p245 = pnand %p243, %p244
      %p246 = pneg %p245
      // Predicated region
      $region71: #{_pa_layer_impl.1} parent=5 // pred_check
        _
      $region72: #{_pa_layer_impl.1} parent=5 // pred_check_branch
        %248 = sbr.rel (%p245) target = $region74
      $region73: #{_pa_layer_impl.1} parent=5 // pred_region
        %s249 = ssub.s32 %s13, 1
        %s250 = sand.u32 %s40, 1
        %s251 = sand.u32 %s40, 1
        %s252 = smul.addr %s251, 16
        %s253 = scalar_lea.vmem [#allocation3], %s252
        // Predicated region
        $region75: #{_pa_layer_impl.1} parent=73 // pred_check
          %p254 = pneg %p53
        $region76: #{_pa_layer_impl.1} parent=73 // pred_check_branch
          %256 = sbr.rel (%p254) target = $region78
        $region77: #{_pa_layer_impl.1} parent=73 // pred_region
          _
        $region78: #{_pa_layer_impl.1} parent=73 // pred_fallthru
          _
        %s257 = sand.u32 %s40, 1
        %s258 = sand.u32 %s40, 1
        %s259 = smul.addr %s258, 16
        %s260 = scalar_lea.vmem [#allocation3], %s259
        %p261 = pneg %p53
        %p262 = pneg %p50
        %p263 = pneg %p74
        %p264 = pneg %p71
        %p265 = pneg %p95
        %p266 = pneg %p92
        %p267 = pneg %p116
        %p268 = pneg %p113
        %p269 = pneg %p137
        %p270 = pneg %p134
        %p271 = pneg %p165
        %p272 = pneg %p162
        %s273 = sand.u32 %s152, 1
        %s274 = sand.u32 %s152, 1
        %s275 = smul.addr %s274, 16
        %s276 = scalar_lea.vmem [#allocation4], %s275
        %v277 = vld [vmem:[%s253] sm:$0xff]
        %v278 = vld [vmem:[%s253 + $0x8] sm:$0xff]
        %v279 = vld [vmem:[%s1] sm:$0x3]
        %v280 = vld [vmem:[%s2] sm:$0x3]
        %282 = vset.pattern.permute.xlu0 0
        %283 = vperm.xlu0 %282, %v280
        %v284 = vpop.permute.xlu0 %283
        %vm286 = vcmask 130048
        %v288 = vsel %vm286, %v279, 0
        %290 = vmatprep.subr.mxu0 0.0
        %291 = vmatpush1.msra.mxu0 %v277
        %292 = vmatprep.subr.mxu0 0.0
        %293 = vmatpush1.msra.mxu0 %v278
        %294 = vmatprep.subr.mxu0 0.0
        %295 = vmatpush1.msra.mxu0 0.0
        %296 = vmatprep.subr.mxu0 0.0
        %297 = vmatpush1.msra.mxu0 0.0
        %298 = vmatprep.subr.mxu0 0.0
        %299 = vmatpush1.msra.mxu0 0.0
        %300 = vmatprep.subr.mxu0 0.0
        %301 = vmatpush1.msra.mxu0 0.0
        %302 = vmatprep.subr.mxu0 0.0
        %303 = vmatpush1.msra.mxu0 0.0
        %304 = vmatprep.subr.mxu0 0.0
        %305 = vmatpush1.msra.mxu0 0.0
        %306 = vmatprep.subr.mxu0 0.0
        %307 = vmatpush1.msra.mxu0 0.0
        %308 = vmatprep.subr.mxu0 0.0
        %309 = vmatpush1.msra.mxu0 0.0
        %310 = vmatprep.subr.mxu0 0.0
        %311 = vmatpush1.msra.mxu0 0.0
        %312 = vmatprep.subr.mxu0 0.0
        %313 = vmatpush1.msra.mxu0 0.0
        %314 = vmatprep.subr.mxu0 0.0
        %315 = vmatpush1.msra.mxu0 0.0
        %316 = vmatprep.subr.mxu0 0.0
        %317 = vmatpush1.msra.mxu0 0.0
        %318 = vmatprep.subr.mxu0 0.0
        %319 = vmatpush1.msra.mxu0 0.0
        %320 = vmatprep.subr.mxu0 0.0
        %321 = vmatpush1.msra.mxu0 0.0
        %322 = vmatprep.subr.mxu0 0.0
        %323 = vmatpush1.msra.mxu0 0.0
        %324 = vmatprep.subr.mxu0 0.0
        %325 = vmatpush1.msra.mxu0 0.0
        %326 = vmatprep.subr.mxu0 0.0
        %327 = vmatpush1.msra.mxu0 0.0
        %328 = vmatprep.subr.mxu0 0.0
        %329 = vmatpush1.msra.mxu0 0.0
        %330 = vmatprep.subr.mxu0 0.0
        %331 = vmatpush1.msra.mxu0 0.0
        %332 = vmatprep.subr.mxu0 0.0
        %333 = vmatpush1.msra.mxu0 0.0
        %334 = vmatprep.subr.mxu0 0.0
        %335 = vmatpush1.msra.mxu0 0.0
        %336 = vmatprep.subr.mxu0 0.0
        %337 = vmatpush1.msra.mxu0 0.0
        %338 = vmatprep.subr.mxu0 0.0
        %339 = vmatpush1.msra.mxu0 0.0
        %340 = vmatprep.subr.mxu0 0.0
        %341 = vmatpush1.msra.mxu0 0.0
        %342 = vmatprep.subr.mxu0 0.0
        %343 = vmatpush1.msra.mxu0 0.0
        %344 = vmatprep.subr.mxu0 0.0
        %345 = vmatpush1.msra.mxu0 0.0
        %346 = vmatprep.subr.mxu0 0.0
        %347 = vmatpush1.msra.mxu0 0.0
        %348 = vmatprep.subr.mxu0 0.0
        %349 = vmatpush1.msra.mxu0 0.0
        %350 = vmatprep.subr.mxu0 0.0
        %351 = vmatpush1.msra.mxu0 0.0
        %352 = vmatprep.subr.mxu0 0.0
        %353 = vmatpush1.msra.mxu0 0.0
        %354 = vmatprep.mubr.f32.mxu0 0.0
        %355 = vmatmul.mubr.f32.gmra.mrb[0].mxu0 %v288
        %v356 = vpop.f32.mrb[0].mxu0
        %v357 = vadd.f32 %v284, %v356
        %v358 = vpop.f32.mrb[0].mxu0
        %359 = vdwg.mxu0
        %v360 = vmax.f32 %v357, 0.0
        %v361 = vld [vmem:[%s3] sm:$0x3]
        %363 = vset.pattern.permute.xlu0 0
        %364 = vperm.xlu0 %363, %v361
        %v365 = vpop.permute.xlu0 %364
        %v367 = vmul.f32 %v365, %v360
        %vm368 = vcmask 1041408
        %v369 = vsel %vm368, %v367, 0.0
        %v370 = vrot.slane %v369, 4
        %v371 = vadd.f32 %v369, %v370
        %v372 = vrot.slane %v371, 2
        %v373 = vadd.f32 %v371, %v372
        %v374 = vrot.slane %v373, 1
        %v375 = vadd.f32 %v373, %v374
        %v376 = vld [vmem:[#allocation2] sm:$0x1]
        %378 = vset.pattern.permute.xlu0 0
        %379 = vperm.xlu0 %378, %v376
        %v380 = vpop.permute.xlu0 %379
        %v382 = vlaneseq
        %v383 = vshrl.u32 %v382, 7
        %v384 = vsub.s32 0, %v383
        %v385 = vrot.slane %v380, %v384
        %v386 = vadd.f32 %v375, %v385
        %v387 = vxor.u32 %v386, 2147483648
        %v388 = vmul.f32 %v387, 1.442695
        %v389 = vpow.pop %v388
        %v390 = vadd.f32 %v389, 1.0
        %v391 = vrcp.pop %v390
        %v392 = vmul.f32 1.0, %v391
        %v393 = vmul.f32 %v277, %v392
        %v394 = vmul.f32 %v278, %v392
        %395 = vst [vmem:[%s276] sm:$0xff] %v393
        %396 = vst [vmem:[%s276 + $0x8] sm:$0xff] %v394
        %s397 = sand.u32 %s152, 1
        %s398 = sand.u32 %s152, 1
        %s399 = smul.addr %s398, 16
        %s400 = scalar_lea.vmem [#allocation4], %s399
        // Predicated region
        $region79: #{_pa_layer_impl.1} parent=73 // pred_check
          %p401 = pneg %p162
        $region80: #{_pa_layer_impl.1} parent=73 // pred_check_branch
          %403 = sbr.rel (%p401) target = $region82
        $region81: #{_pa_layer_impl.1} parent=73 // pred_region
          %s404 = smul.addr %s22, 4
          %s405 = sadd.s32 %s23, %s404
          %s406 = smul.addr %s405, 8
          %s407 = scalar_lea.vmem %s5, %s406
          // Predicated region
          $region83: #{_pa_layer_impl.1} parent=81 // pred_check
            _
          $region84: #{_pa_layer_impl.1} parent=81 // pred_check_branch
            %409 = sbr.rel (0) target = $region86
          $region85: #{_pa_layer_impl.1} parent=81 // pred_region
            // Predicated region
            $region87: #{_pa_layer_impl.1} parent=85 // pred_check
              _
            $region88: #{_pa_layer_impl.1} parent=85 // pred_check_branch
              %411 = sbr.rel (0) target = $region90
            $region89: #{_pa_layer_impl.1} parent=85 // pred_region
              // Predicated region
              $region102: #{_pa_layer_impl.1} parent=89 // pred_check
                _
              $region103: #{_pa_layer_impl.1} parent=89 // pred_check_branch
                %428 = sbr.rel (0) target = $region105
              $region104: #{_pa_layer_impl.1} parent=89 // pred_region
                loop: start=0, step=1, limit=1
                $region106: #{_pa_layer_impl.1} parent=104 // loop_pre_header
                  _
                $region107: #{_pa_layer_impl.1} parent=104 // loop_header
                  %s430 = sphi 0, %s434
                  %p431 = scmp.ge.s32.totalorder %s430, 1
                  %s435 = sphi %s400, %s400
                  %s436 = sphi %s407, %s407
                $region108: #{_pa_layer_impl.1} parent=104 // loop_header_branch
                  %433 = sbr.rel (%p431) target = $region112
                $region109: #{_pa_layer_impl.1} parent=104 // loop_body
                  %v437 = vld [vmem:[%s435] sm:$0xff]
                  %438 = vst [vmem:[%s436] sm:$0xff] %v437
                  %v439 = vld [vmem:[%s435 + $0x8] sm:$0xff]
                  %440 = vst [vmem:[%s436 + $0x10] sm:$0xff] %v439
                $region110: #{_pa_layer_impl.1} parent=104 // loop_footer
                  %s434 = sadd.s32 1, %s430
                $region111: #{_pa_layer_impl.1} parent=104 // loop_footer_branch
                  %429 = sbr.rel target = $region107
                $region112: #{_pa_layer_impl.1} parent=104 // loop_exit
                  _
              $region105: #{_pa_layer_impl.1} parent=89 // pred_fallthru
                _
              // Predicated region
              $region113: #{_pa_layer_impl.1} parent=89 // pred_check
                _
              $region114: #{_pa_layer_impl.1} parent=89 // pred_check_branch
                %442 = sbr.rel target = $region116
              $region115: #{_pa_layer_impl.1} parent=89 // pred_region
                _
              $region116: #{_pa_layer_impl.1} parent=89 // pred_fallthru
                _
            $region90: #{_pa_layer_impl.1} parent=85 // pred_fallthru
              _
            // Predicated region
            $region91: #{_pa_layer_impl.1} parent=85 // pred_check
              _
            $region92: #{_pa_layer_impl.1} parent=85 // pred_check_branch
              %413 = sbr.rel target = $region94
            $region93: #{_pa_layer_impl.1} parent=85 // pred_region
              loop: start=0, step=1, limit=1
              $region95: #{_pa_layer_impl.1} parent=93 // loop_pre_header
                _
              $region96: #{_pa_layer_impl.1} parent=93 // loop_header
                %s416 = sphi 0, %s420
                %p417 = scmp.ge.s32.totalorder %s416, 1
                %s421 = sphi %s400, %s400
                %s422 = sphi %s407, %s407
              $region97: #{_pa_layer_impl.1} parent=93 // loop_header_branch
                %419 = sbr.rel (%p417) target = $region101
              $region98: #{_pa_layer_impl.1} parent=93 // loop_body
                %v423 = vld [vmem:[%s421] sm:$0xff]
                %424 = vst [vmem:[%s422] sm:$0xff] %v423
                %v425 = vld [vmem:[%s421 + $0x8] sm:$0xff]
                %426 = vst [vmem:[%s422 + $0x10] sm:$0xff] %v425
              $region99: #{_pa_layer_impl.1} parent=93 // loop_footer
                %s420 = sadd.s32 1, %s416
              $region100: #{_pa_layer_impl.1} parent=93 // loop_footer_branch
                %415 = sbr.rel target = $region96
              $region101: #{_pa_layer_impl.1} parent=93 // loop_exit
                _
            $region94: #{_pa_layer_impl.1} parent=85 // pred_fallthru
              _
          $region86: #{_pa_layer_impl.1} parent=81 // pred_fallthru
            _
          %443 = vnop
        $region82: #{_pa_layer_impl.1} parent=73 // pred_fallthru
          _
      $region74: #{_pa_layer_impl.1} parent=5 // pred_fallthru
        _
      %p444 = scmp.le.s32.totalorder 2, %s13
      // Predicated region
      $region117: #{_pa_layer_impl.1} parent=5 // pred_check
        %p445 = pneg %p444
      $region118: #{_pa_layer_impl.1} parent=5 // pred_check_branch
        %447 = sbr.rel (%p445) target = $region120
      $region119: #{_pa_layer_impl.1} parent=5 // pred_region
        %s448 = ssub.s32 %s13, 2
        // Predicated region
        $region121: #{_pa_layer_impl.1} parent=119 // pred_check
          %p449 = pneg %p168
        $region122: #{_pa_layer_impl.1} parent=119 // pred_check_branch
          %451 = sbr.rel (%p449) target = $region124
        $region123: #{_pa_layer_impl.1} parent=119 // pred_region
          %s452 = sand.u32 %s153, 1
          %s453 = sand.u32 %s153, 1
          %s454 = smul.addr %s453, 16
          %s455 = scalar_lea.vmem [#allocation4], %s454
        $region124: #{_pa_layer_impl.1} parent=119 // pred_fallthru
          _
      $region120: #{_pa_layer_impl.1} parent=5 // pred_fallthru
        _
    $region6: #{_pa_layer_impl.1} parent=1 // loop_footer
      %s17 = sadd.s32 1, %s13
    $region7: #{_pa_layer_impl.1} parent=1 // loop_footer_branch
      %12 = sbr.rel target = $region3
    $region8: #{_pa_layer_impl.1} parent=1 // loop_exit
      _

</llo_original>
